<compile_context>
chip_gen: v6e
topology: v6e:2x2x1
jax: 0.10.0
libtpu: 0.0.40
codegen_flags: <defaults>
</compile_context>

<pallas_src>
import jax
import jax.numpy as jnp
from jax import lax
from jax.experimental import pallas as pl
from jax.experimental.pallas import tpu as pltpu

# ---- model sizes (consistent with CartPole-v1 + params dict) ----
OBS = 4           # observation_size (CartPole-v1)
ACTION = 2        # action_size (CartPole-v1)
INNER = 32        # params['PROTOTYPE_SIZE_INNER']
PS = 16           # params['PROTOTYPE_SIZE']
NUM_PROTOS = 8    # params['NUM_PROTOTYPES']
DQN_HIDDEN = 64   # hidden width of cartpole_dqn.eval_net (Linear -> ReLU -> Linear MLP)
BATCH = 8

LANES = 128                                   # lane width of packed slabs
OUT_COLS = PS + OBS + ACTION + NUM_PROTOS     # 30 payload columns in the output slab

# Parameter order (PyTorch nn.Linear weights are pre-transposed to [in, out];
# biases stored as [1, out] rows).
_PARAM_SHAPES = [
    ("ew1", (OBS, INNER)),   ("eb1", (1, INNER)),
    ("ew2", (INNER, INNER)), ("eb2", (1, INNER)),
    ("ew3", (INNER, PS)),    ("eb3", (1, PS)),
    ("dw1", (PS, INNER)),    ("db1", (1, INNER)),
    ("dw2", (INNER, INNER)), ("db2", (1, INNER)),
    ("dw3", (INNER, OBS)),   ("db3", (1, OBS)),
    ("protos", (NUM_PROTOS, PS)),
    ("qw1", (OBS, DQN_HIDDEN)), ("qb1", (1, DQN_HIDDEN)),
    ("qw2", (DQN_HIDDEN, ACTION)), ("qb2", (1, ACTION)),
]


def _build_layout():
    """Row offsets inside the packed [rows, 128] parameter slab (8-row aligned blocks)."""
    layout = {}
    off = 0
    for name, (r, c) in _PARAM_SHAPES:
        layout[name] = (off, r, c)
        off += ((r + 7) // 8) * 8
    return layout, off


_LAYOUT, _PACK_ROWS = _build_layout()


def pack_params(params):
    """Pack all 17 parameters into one lane-padded f32[_PACK_ROWS, 128] slab.

    In a real RL loop this is done once per weight update, not per forward call.
    """
    slab = jnp.zeros((_PACK_ROWS, LANES), jnp.float32)
    for (name, _), p in zip(_PARAM_SHAPES, params):
        off, r, c = _LAYOUT[name]
        slab = slab.at[off:off + r, 0:c].set(p.astype(jnp.float32))
    return slab


# ---------------- the fused kernel ----------------
def protonet_kernel(x_ref, pk_ref, out_ref):
    def load(name):
        off, r, c = _LAYOUT[name]
        return pk_ref[off:off + r, 0:c]      # static, tile-aligned slice of the slab

    # Hoist every weight/bias load once (decode weights used by two decode() calls).
    ew1, eb1 = load("ew1"), load("eb1")
    ew2, eb2 = load("ew2"), load("eb2")
    ew3, eb3 = load("ew3"), load("eb3")
    dw1, db1 = load("dw1"), load("db1")
    dw2, db2 = load("dw2"), load("db2")
    dw3, db3 = load("dw3"), load("db3")
    protos = load("protos")                  # [P, PS]
    qw1, qb1 = load("qw1"), load("qb1")
    qw2, qb2 = load("qw2"), load("qb2")

    x = x_ref[...]                           # [B, OBS]
    B = x.shape[0]

    def lin(a, w, b):
        return jnp.dot(a, w, preferred_element_type=jnp.float32) + b

    def relu(a):
        return jnp.maximum(a, 0.0)

    def decode(a):
        a = relu(lin(a, dw1, db1))
        a = relu(lin(a, dw2, db2))
        return lin(a, dw3, db3)

    # ---- x-dependent path: encode -> recon ----
    z = relu(lin(x, ew1, eb1))
    z = relu(lin(z, ew2, eb2))
    z = relu(lin(z, ew3, eb3))               # transform_input  [B, PS]
    recon = decode(z)                        # recon_input      [B, OBS]

    # ---- prototype-only path (independent of x; interleaves with encode) ----
    # decoded_prototypes == decode(prototypes) from the torch forward; feeding it through the
    # DQN head for every prototype lets a single onehot matmul follow the argmin.
    dp_all = decode(protos)                                    # [P, OBS]
    q_all = lin(relu(lin(dp_all, qw1, qb1)), qw2, qb2)         # [P, ACTION]

    # ---- list_of_distances(z, prototypes): ||z_i - p_j||^2 ----
    znorm = jnp.sum(z * z, axis=-1, keepdims=True)             # [B, 1]
    pnorm = jnp.sum(protos * protos, axis=-1, keepdims=True)   # [P, 1]
    cross = lax.dot_general(z, protos, (((1,), (1,)), ((), ())),
                            preferred_element_type=jnp.float32)  # [B, P]
    pdifs = znorm + pnorm.T - 2.0 * cross                      # [B, P]
    # feature_difs == pdifs.T exactly; the wrapper returns the transpose (no 2nd matmul).

    # ---- argmin prototype selection (first index on ties, like torch.argmin) ----
    # NOTE: non-finite pdifs rows would yield an all-zero onehot (ref argmin would still pick
    # an index); only matters for NaN/inf inputs.
    idx = lax.broadcasted_iota(jnp.int32, pdifs.shape, 1)
    row_min = jnp.min(pdifs, axis=1, keepdims=True)
    first_min = jnp.min(jnp.where(pdifs == row_min, idx, pdifs.shape[1]),
                        axis=1, keepdims=True)
    onehot = (idx == first_min).astype(jnp.float32)            # [B, P]
    q = jnp.dot(onehot, q_all, preferred_element_type=jnp.float32)  # [B, ACTION]

    # ---- single lane-dense [B, 128] output slab, one unmasked full-tile store ----
    pad = jnp.zeros((B, LANES - OUT_COLS), jnp.float32)
    out_ref[...] = jnp.concatenate([z, recon, q, pdifs, pad], axis=-1)


# ---------------- wrapper ----------------
def protonet_forward(x, params):
    slab = pack_params(params)
    B = x.shape[0]

    flops = 2 * B * (OBS * INNER + INNER * INNER + INNER * PS)            # encode
    flops += 2 * B * (PS * INNER + INNER * INNER + INNER * OBS)           # decode(z)
    flops += 2 * NUM_PROTOS * (PS * INNER + INNER * INNER + INNER * OBS)  # decode(protos)
    flops += 2 * NUM_PROTOS * (OBS * DQN_HIDDEN + DQN_HIDDEN * ACTION)    # DQN head
    flops += 2 * B * NUM_PROTOS * (PS + ACTION)                           # cross + select
    bytes_accessed = 4 * (x.size + slab.size + B * LANES)

    vmem = lambda: pl.BlockSpec(memory_space=pltpu.MemorySpace.VMEM)
    out = pl.pallas_call(
        protonet_kernel,
        out_shape=jax.ShapeDtypeStruct((B, LANES), jnp.float32),
        in_specs=[vmem(), vmem()],
        out_specs=vmem(),
        cost_estimate=pl.CostEstimate(flops=flops, transcendentals=0,
                                      bytes_accessed=bytes_accessed),
    )(x, slab)

    trans = out[:, 0:PS]                                   # transform_input
    recon = out[:, PS:PS + OBS]                            # recon_input
    q = out[:, PS + OBS:PS + OBS + ACTION]                 # DQN output
    pdifs = out[:, PS + OBS + ACTION:OUT_COLS]             # prototypes_difs [B, P]
    fdifs = pdifs.T                                        # feature_difs == pdifs.T  [P, B]
    protos = params[12]
    # same return signature as the torch module
    return trans, recon, protos, q, pdifs, fdifs


# ---------------- parameter construction (deterministic, synthetic) ----------------
def make_linear(key, fan_in, fan_out):
    kw, kb = jax.random.split(key)
    bound = 1.0 / (fan_in ** 0.5)
    w = jax.random.uniform(kw, (fan_in, fan_out), jnp.float32, -bound, bound)  # [in, out]
    b = jax.random.uniform(kb, (1, fan_out), jnp.float32, -bound, bound)       # [1, out]
    return w, b


def make_params(key):
    keys = jax.random.split(key, 10)
    ew1, eb1 = make_linear(keys[0], OBS, INNER)
    ew2, eb2 = make_linear(keys[1], INNER, INNER)
    ew3, eb3 = make_linear(keys[2], INNER, PS)
    dw1, db1 = make_linear(keys[3], PS, INNER)
    dw2, db2 = make_linear(keys[4], INNER, INNER)
    dw3, db3 = make_linear(keys[5], INNER, OBS)
    protos = jax.random.uniform(keys[6], (NUM_PROTOS, PS), jnp.float32)  # torch.rand
    qw1, qb1 = make_linear(keys[7], OBS, DQN_HIDDEN)
    qw2, qb2 = make_linear(keys[8], DQN_HIDDEN, ACTION)
    return (ew1, eb1, ew2, eb2, ew3, eb3,
            dw1, db1, dw2, db2, dw3, db3,
            protos, qw1, qb1, qw2, qb2)


# ---------------- pure-JAX reference for verification ----------------
def ref_forward(x, params):
    (ew1, eb1, ew2, eb2, ew3, eb3,
     dw1, db1, dw2, db2, dw3, db3,
     protos, qw1, qb1, qw2, qb2) = params

    def lin(a, w, b):
        return a @ w + b

    def enc(a):
        a = jnp.maximum(lin(a, ew1, eb1), 0.0)
        a = jnp.maximum(lin(a, ew2, eb2), 0.0)
        return jnp.maximum(lin(a, ew3, eb3), 0.0)

    def dec(a):
        a = jnp.maximum(lin(a, dw1, db1), 0.0)
        a = jnp.maximum(lin(a, dw2, db2), 0.0)
        return lin(a, dw3, db3)

    def lod(X, Y):
        return (jnp.sum(X * X, -1, keepdims=True) + jnp.sum(Y * Y, -1)[None, :]
                - 2.0 * X @ Y.T)

    z = enc(x)
    recon = dec(z)
    pdifs = lod(z, protos)
    fdifs = lod(protos, z)
    best = protos[jnp.argmin(pdifs, axis=1)]
    dp = dec(best)
    q = lin(jnp.maximum(lin(dp, qw1, qb1), 0.0), qw2, qb2)
    return z, recon, protos, q, pdifs, fdifs


if __name__ == "__main__":
    key = jax.random.PRNGKey(0)
    k_x, k_p = jax.random.split(key)
    x = jax.random.normal(k_x, (BATCH, OBS), jnp.float32)
    params = make_params(k_p)

    outs = protonet_forward(x, params)
    outs = jax.block_until_ready(outs)

    refs = ref_forward(x, params)
    for got, want in zip(outs, refs):
        assert got.shape == want.shape, (got.shape, want.shape)
        assert jnp.allclose(got, want, atol=1e-4, rtol=1e-4), "mismatch vs reference"

    print("KERNEL_OK")
</pallas_src>

<mosaic_0001>
module attributes {stable_mosaic.version = 11 : i64} {
  func.func @protonet_kernel(%arg0: memref<8x4xf32, #tpu.memory_space<vmem>>, %arg1: memref<296x128xf32, #tpu.memory_space<vmem>>, %arg2: memref<8x128xf32, #tpu.memory_space<vmem>>) attributes {dimension_semantics = [], scalar_prefetch = 0 : i64, scratch_operands = 0 : i64, tpu.core_type = #tpu.core_type<tc>} {
    %c0 = arith.constant 0 : index
    %c0_0 = arith.constant 0 : index
    %0 = vector.load %arg1[%c0, %c0_0] : memref<296x128xf32, #tpu.memory_space<vmem>>, vector<4x32xf32>
    %c8 = arith.constant 8 : index
    %c0_1 = arith.constant 0 : index
    %1 = vector.load %arg1[%c8, %c0_1] : memref<296x128xf32, #tpu.memory_space<vmem>>, vector<1x32xf32>
    %c16 = arith.constant 16 : index
    %c0_2 = arith.constant 0 : index
    %2 = vector.load %arg1[%c16, %c0_2] : memref<296x128xf32, #tpu.memory_space<vmem>>, vector<32x32xf32>
    %c48 = arith.constant 48 : index
    %c0_3 = arith.constant 0 : index
    %3 = vector.load %arg1[%c48, %c0_3] : memref<296x128xf32, #tpu.memory_space<vmem>>, vector<1x32xf32>
    %c56 = arith.constant 56 : index
    %c0_4 = arith.constant 0 : index
    %4 = vector.load %arg1[%c56, %c0_4] : memref<296x128xf32, #tpu.memory_space<vmem>>, vector<32x16xf32>
    %c88 = arith.constant 88 : index
    %c0_5 = arith.constant 0 : index
    %5 = vector.load %arg1[%c88, %c0_5] : memref<296x128xf32, #tpu.memory_space<vmem>>, vector<1x16xf32>
    %c96 = arith.constant 96 : index
    %c0_6 = arith.constant 0 : index
    %6 = vector.load %arg1[%c96, %c0_6] : memref<296x128xf32, #tpu.memory_space<vmem>>, vector<16x32xf32>
    %c112 = arith.constant 112 : index
    %c0_7 = arith.constant 0 : index
    %7 = vector.load %arg1[%c112, %c0_7] : memref<296x128xf32, #tpu.memory_space<vmem>>, vector<1x32xf32>
    %c120 = arith.constant 120 : index
    %c0_8 = arith.constant 0 : index
    %8 = vector.load %arg1[%c120, %c0_8] : memref<296x128xf32, #tpu.memory_space<vmem>>, vector<32x32xf32>
    %c152 = arith.constant 152 : index
    %c0_9 = arith.constant 0 : index
    %9 = vector.load %arg1[%c152, %c0_9] : memref<296x128xf32, #tpu.memory_space<vmem>>, vector<1x32xf32>
    %c160 = arith.constant 160 : index
    %c0_10 = arith.constant 0 : index
    %10 = vector.load %arg1[%c160, %c0_10] : memref<296x128xf32, #tpu.memory_space<vmem>>, vector<32x4xf32>
    %c192 = arith.constant 192 : index
    %c0_11 = arith.constant 0 : index
    %11 = vector.load %arg1[%c192, %c0_11] : memref<296x128xf32, #tpu.memory_space<vmem>>, vector<1x4xf32>
    %c200 = arith.constant 200 : index
    %c0_12 = arith.constant 0 : index
    %12 = vector.load %arg1[%c200, %c0_12] : memref<296x128xf32, #tpu.memory_space<vmem>>, vector<8x16xf32>
    %c208 = arith.constant 208 : index
    %c0_13 = arith.constant 0 : index
    %13 = vector.load %arg1[%c208, %c0_13] : memref<296x128xf32, #tpu.memory_space<vmem>>, vector<4x64xf32>
    %c216 = arith.constant 216 : index
    %c0_14 = arith.constant 0 : index
    %14 = vector.load %arg1[%c216, %c0_14] : memref<296x128xf32, #tpu.memory_space<vmem>>, vector<1x64xf32>
    %c224 = arith.constant 224 : index
    %c0_15 = arith.constant 0 : index
    %15 = vector.load %arg1[%c224, %c0_15] : memref<296x128xf32, #tpu.memory_space<vmem>>, vector<64x2xf32>
    %c288 = arith.constant 288 : index
    %c0_16 = arith.constant 0 : index
    %16 = vector.load %arg1[%c288, %c0_16] : memref<296x128xf32, #tpu.memory_space<vmem>>, vector<1x2xf32>
    %c0_17 = arith.constant 0 : index
    %c0_18 = arith.constant 0 : index
    %17 = vector.load %arg0[%c0_17, %c0_18] : memref<8x4xf32, #tpu.memory_space<vmem>>, vector<8x4xf32>
    %cst = arith.constant dense<0.000000e+00> : vector<8x32xf32>
    %18 = tpu.matmul %17, %0, %cst {dimension_numbers = #tpu.dot_dimension_numbers<[1], [0], [0], [1], [0, 0, 1, 1], [], []>} : vector<8x4xf32>, vector<4x32xf32>, vector<8x32xf32> -> vector<8x32xf32>
    %19 = vector.broadcast %1 : vector<1x32xf32> to vector<8x32xf32>
    %20 = arith.addf %18, %19 : vector<8x32xf32>
    %cst_19 = arith.constant 0.000000e+00 : f32
    %21 = vector.broadcast %cst_19 : f32 to vector<8x32xf32>
    %22 = arith.maximumf %20, %21 : vector<8x32xf32>
    %cst_20 = arith.constant dense<0.000000e+00> : vector<8x32xf32>
    %23 = tpu.matmul %22, %2, %cst_20 {dimension_numbers = #tpu.dot_dimension_numbers<[1], [0], [0], [1], [0, 0, 1, 1], [], []>} : vector<8x32xf32>, vector<32x32xf32>, vector<8x32xf32> -> vector<8x32xf32>
    %24 = vector.broadcast %3 : vector<1x32xf32> to vector<8x32xf32>
    %25 = arith.addf %23, %24 : vector<8x32xf32>
    %cst_21 = arith.constant 0.000000e+00 : f32
    %26 = vector.broadcast %cst_21 : f32 to vector<8x32xf32>
    %27 = arith.maximumf %25, %26 : vector<8x32xf32>
    %cst_22 = arith.constant dense<0.000000e+00> : vector<8x16xf32>
    %28 = tpu.matmul %27, %4, %cst_22 {dimension_numbers = #tpu.dot_dimension_numbers<[1], [0], [0], [1], [0, 0, 1, 1], [], []>} : vector<8x32xf32>, vector<32x16xf32>, vector<8x16xf32> -> vector<8x16xf32>
    %29 = vector.broadcast %5 : vector<1x16xf32> to vector<8x16xf32>
    %30 = arith.addf %28, %29 : vector<8x16xf32>
    %cst_23 = arith.constant 0.000000e+00 : f32
    %31 = vector.broadcast %cst_23 : f32 to vector<8x16xf32>
    %32 = arith.maximumf %30, %31 : vector<8x16xf32>
    %cst_24 = arith.constant dense<0.000000e+00> : vector<8x32xf32>
    %33 = tpu.matmul %32, %6, %cst_24 {dimension_numbers = #tpu.dot_dimension_numbers<[1], [0], [0], [1], [0, 0, 1, 1], [], []>} : vector<8x16xf32>, vector<16x32xf32>, vector<8x32xf32> -> vector<8x32xf32>
    %34 = vector.broadcast %7 : vector<1x32xf32> to vector<8x32xf32>
    %35 = arith.addf %33, %34 : vector<8x32xf32>
    %cst_25 = arith.constant 0.000000e+00 : f32
    %36 = vector.broadcast %cst_25 : f32 to vector<8x32xf32>
    %37 = arith.maximumf %35, %36 : vector<8x32xf32>
    %cst_26 = arith.constant dense<0.000000e+00> : vector<8x32xf32>
    %38 = tpu.matmul %37, %8, %cst_26 {dimension_numbers = #tpu.dot_dimension_numbers<[1], [0], [0], [1], [0, 0, 1, 1], [], []>} : vector<8x32xf32>, vector<32x32xf32>, vector<8x32xf32> -> vector<8x32xf32>
    %39 = vector.broadcast %9 : vector<1x32xf32> to vector<8x32xf32>
    %40 = arith.addf %38, %39 : vector<8x32xf32>
    %cst_27 = arith.constant 0.000000e+00 : f32
    %41 = vector.broadcast %cst_27 : f32 to vector<8x32xf32>
    %42 = arith.maximumf %40, %41 : vector<8x32xf32>
    %cst_28 = arith.constant dense<0.000000e+00> : vector<8x4xf32>
    %43 = tpu.matmul %42, %10, %cst_28 {dimension_numbers = #tpu.dot_dimension_numbers<[1], [0], [0], [1], [0, 0, 1, 1], [], []>} : vector<8x32xf32>, vector<32x4xf32>, vector<8x4xf32> -> vector<8x4xf32>
    %44 = vector.broadcast %11 : vector<1x4xf32> to vector<8x4xf32>
    %45 = arith.addf %43, %44 : vector<8x4xf32>
    %cst_29 = arith.constant dense<0.000000e+00> : vector<8x32xf32>
    %46 = tpu.matmul %12, %6, %cst_29 {dimension_numbers = #tpu.dot_dimension_numbers<[1], [0], [0], [1], [0, 0, 1, 1], [], []>} : vector<8x16xf32>, vector<16x32xf32>, vector<8x32xf32> -> vector<8x32xf32>
    %47 = vector.broadcast %7 : vector<1x32xf32> to vector<8x32xf32>
    %48 = arith.addf %46, %47 : vector<8x32xf32>
    %cst_30 = arith.constant 0.000000e+00 : f32
    %49 = vector.broadcast %cst_30 : f32 to vector<8x32xf32>
    %50 = arith.maximumf %48, %49 : vector<8x32xf32>
    %cst_31 = arith.constant dense<0.000000e+00> : vector<8x32xf32>
    %51 = tpu.matmul %50, %8, %cst_31 {dimension_numbers = #tpu.dot_dimension_numbers<[1], [0], [0], [1], [0, 0, 1, 1], [], []>} : vector<8x32xf32>, vector<32x32xf32>, vector<8x32xf32> -> vector<8x32xf32>
    %52 = vector.broadcast %9 : vector<1x32xf32> to vector<8x32xf32>
    %53 = arith.addf %51, %52 : vector<8x32xf32>
    %cst_32 = arith.constant 0.000000e+00 : f32
    %54 = vector.broadcast %cst_32 : f32 to vector<8x32xf32>
    %55 = arith.maximumf %53, %54 : vector<8x32xf32>
    %cst_33 = arith.constant dense<0.000000e+00> : vector<8x4xf32>
    %56 = tpu.matmul %55, %10, %cst_33 {dimension_numbers = #tpu.dot_dimension_numbers<[1], [0], [0], [1], [0, 0, 1, 1], [], []>} : vector<8x32xf32>, vector<32x4xf32>, vector<8x4xf32> -> vector<8x4xf32>
    %57 = vector.broadcast %11 : vector<1x4xf32> to vector<8x4xf32>
    %58 = arith.addf %56, %57 : vector<8x4xf32>
    %cst_34 = arith.constant dense<0.000000e+00> : vector<8x64xf32>
    %59 = tpu.matmul %58, %13, %cst_34 {dimension_numbers = #tpu.dot_dimension_numbers<[1], [0], [0], [1], [0, 0, 1, 1], [], []>} : vector<8x4xf32>, vector<4x64xf32>, vector<8x64xf32> -> vector<8x64xf32>
    %60 = vector.broadcast %14 : vector<1x64xf32> to vector<8x64xf32>
    %61 = arith.addf %59, %60 : vector<8x64xf32>
    %cst_35 = arith.constant 0.000000e+00 : f32
    %62 = vector.broadcast %cst_35 : f32 to vector<8x64xf32>
    %63 = arith.maximumf %61, %62 : vector<8x64xf32>
    %cst_36 = arith.constant dense<0.000000e+00> : vector<8x2xf32>
    %64 = tpu.matmul %63, %15, %cst_36 {dimension_numbers = #tpu.dot_dimension_numbers<[1], [0], [0], [1], [0, 0, 1, 1], [], []>} : vector<8x64xf32>, vector<64x2xf32>, vector<8x2xf32> -> vector<8x2xf32>
    %65 = vector.broadcast %16 : vector<1x2xf32> to vector<8x2xf32>
    %66 = arith.addf %64, %65 : vector<8x2xf32>
    %67 = arith.mulf %32, %32 : vector<8x16xf32>
    %cst_37 = arith.constant dense<0.000000e+00> : vector<8xf32>
    %68 = vector.multi_reduction <add>, %67, %cst_37 [1] : vector<8x16xf32> to vector<8xf32>
    %69 = vector.shape_cast %68 : vector<8xf32> to vector<8x1xf32>
    %70 = arith.mulf %12, %12 : vector<8x16xf32>
    %cst_38 = arith.constant dense<0.000000e+00> : vector<8xf32>
    %71 = vector.multi_reduction <add>, %70, %cst_38 [1] : vector<8x16xf32> to vector<8xf32>
    %72 = vector.shape_cast %71 : vector<8xf32> to vector<8x1xf32>
    %cst_39 = arith.constant dense<0.000000e+00> : vector<8x8xf32>
    %73 = tpu.matmul %32, %12, %cst_39 {dimension_numbers = #tpu.dot_dimension_numbers<[1], [1], [0], [0], [0, 0, 1, 0], [], []>} : vector<8x16xf32>, vector<8x16xf32>, vector<8x8xf32> -> vector<8x8xf32>
    %74 = tpu.transpose %72, [1, 0] : vector<8x1xf32> -> vector<1x8xf32>
    %75 = vector.broadcast %69 : vector<8x1xf32> to vector<8x8xf32>
    %76 = vector.broadcast %74 : vector<1x8xf32> to vector<8x8xf32>
    %77 = arith.addf %75, %76 : vector<8x8xf32>
    %cst_40 = arith.constant 2.000000e+00 : f32
    %78 = vector.broadcast %cst_40 : f32 to vector<8x8xf32>
    %79 = arith.mulf %78, %73 : vector<8x8xf32>
    %80 = arith.subf %77, %79 : vector<8x8xf32>
    %81 = tpu.iota {dimensions = array<i32: 1>} : vector<8x8xi32>
    %cst_41 = arith.constant dense<0x7F800000> : vector<8xf32>
    %82 = vector.multi_reduction <minimumf>, %80, %cst_41 [1] : vector<8x8xf32> to vector<8xf32>
    %83 = vector.shape_cast %82 : vector<8xf32> to vector<8x1xf32>
    %84 = vector.broadcast %83 : vector<8x1xf32> to vector<8x8xf32>
    %85 = arith.cmpf oeq, %80, %84 : vector<8x8xf32>
    %c8_i32 = arith.constant 8 : i32
    %86 = vector.broadcast %c8_i32 : i32 to vector<8x8xi32>
    %87 = arith.select %85, %81, %86 : vector<8x8xi1>, vector<8x8xi32>
    %cst_42 = arith.constant dense<2147483647> : vector<8xi32>
    %88 = vector.multi_reduction <minsi>, %87, %cst_42 [1] : vector<8x8xi32> to vector<8xi32>
    %89 = vector.shape_cast %88 : vector<8xi32> to vector<8x1xi32>
    %90 = vector.broadcast %89 : vector<8x1xi32> to vector<8x8xi32>
    %91 = arith.cmpi eq, %81, %90 : vector<8x8xi32>
    %92 = arith.extui %91 : vector<8x8xi1> to vector<8x8xi32>
    %93 = arith.sitofp %92 : vector<8x8xi32> to vector<8x8xf32>
    %cst_43 = arith.constant dense<0.000000e+00> : vector<8x2xf32>
    %94 = tpu.matmul %93, %66, %cst_43 {dimension_numbers = #tpu.dot_dimension_numbers<[1], [0], [0], [1], [0, 0, 1, 1], [], []>} : vector<8x8xf32>, vector<8x2xf32>, vector<8x2xf32> -> vector<8x2xf32>
    %cst_44 = arith.constant 0.000000e+00 : f32
    %95 = vector.broadcast %cst_44 : f32 to vector<8x98xf32>
    %96 = tpu.concatenate %32, %45, %94, %80, %95 in 1 : vector<8x16xf32>, vector<8x4xf32>, vector<8x2xf32>, vector<8x8xf32>, vector<8x98xf32> -> vector<8x128xf32>
    %c0_45 = arith.constant 0 : index
    %c0_46 = arith.constant 0 : index
    %97 = vector.load %arg2[%c0_45, %c0_46] : memref<8x128xf32, #tpu.memory_space<vmem>>, vector<8x128xf32>
    tpu.vector_store %arg2[%c0_45, %c0_46], %96 {strides = array<i32>} : memref<8x128xf32, #tpu.memory_space<vmem>>, vector<8x128xf32>,
    return
  }
}

</mosaic_0001>

<llo_original>
// kernel: tpu_custom_call.1
$region0: #{tpu_custom_call.1}
  #allocation0 [shape = 'u32[]', space=smem, size = 0x4, offset = 0x4, fixed_abs, tag = 'smem constant byte address 0x4 - core index']
  #allocation1 [shape = 'u32[144,128]{1,0:T(1,128)}', space=vmem, size = 0x12000, scoped, tag = 'internal scratch']
  %s0 = inlined_call_operand.vmem [shape: f32[8,4], index: 0, kind: input, shape index: {}]
  %s1 = inlined_call_operand.hbm [shape: f32[296,128], index: 1, kind: input, shape index: {}]
  %s2 = inlined_call_operand.hbm [shape: f32[8,128], index: 2, kind: output, shape index: {}]
  %s3 = sld [smem:[#allocation0]]
  $region22: #{tpu_custom_call.1} parent=0
    _
  %s5 = ssub.s32 1, %s3
  %s6 = scalar_select 0, %s5, %s3
  $region1: #{tpu_custom_call.1} parent=0
    #allocation2 [shape = 'u8[151552]{0}', space=vmem, size = 0x25000, scoped, tag = 'input window, operand 1, single buffered']
    #allocation3 [shape = 's32[1]{0}', space=sflag, size = 0x4, scoped, tag = 'scoped memory for tpu_custom_call.1']
    #allocation4 [shape = 's32[1]{0}', space=sflag, size = 0x4, scoped, tag = 'scoped memory for tpu_custom_call.1']
    #allocation5 [shape = 'u8[4096]{0}', space=vmem, size = 0x1000, scoped, tag = 'output window, operand 0, single buffered']
    %7 = vsyncpa [#allocation3], 0
    %8 = vsyncpa [#allocation4], 0
    // Predicated region
    $region2: #{tpu_custom_call.1} parent=1 // pred_check
      _
    $region3: #{tpu_custom_call.1} parent=1 // pred_check_branch
      %10 = sbr.rel (0) target = $region5
    $region4: #{tpu_custom_call.1} parent=1 // pred_region
      _
    $region5: #{tpu_custom_call.1} parent=1 // pred_fallthru
      _
    // Predicated region
    $region6: #{tpu_custom_call.1} parent=1 // pred_check
      _
    $region7: #{tpu_custom_call.1} parent=1 // pred_check_branch
      %12 = sbr.rel (0) target = $region9
    $region8: #{tpu_custom_call.1} parent=1 // pred_region
      %s14 = ssub.s32 4736, 4736
      %15 = vsyncadd [#allocation3], %s14
      %s16 = sshll.u32 [#allocation2], 4
      %s17 = int_to_ptr.vmem [resolvable:$true] %s16
      %22 = dma.hbm_to_vmem [thread:$0]  %s1, 4736, %s17, [#allocation3], 128, 128, 8
    $region9: #{tpu_custom_call.1} parent=1 // pred_fallthru
      _
    // Predicated region
    $region10: #{tpu_custom_call.1} parent=1 // pred_check
      _
    $region11: #{tpu_custom_call.1} parent=1 // pred_check_branch
      %24 = sbr.rel (0) target = $region13
    $region12: #{tpu_custom_call.1} parent=1 // pred_region
      %25 = dma.done [#allocation3], 4736
    $region13: #{tpu_custom_call.1} parent=1 // pred_fallthru
      _
    %v26 = vld [vmem:[#allocation2] sm:$0xf]
    %v27 = vld [vmem:[#allocation2 + $0x8] sm:$0x1]
    %v28 = vld [vmem:[#allocation2 + $0x10] sm:$0xff]
    %v29 = vld [vmem:[#allocation2 + $0x18] sm:$0xff]
    %v30 = vld [vmem:[#allocation2 + $0x20] sm:$0xff]
    %v31 = vld [vmem:[#allocation2 + $0x28] sm:$0xff]
    %v32 = vld [vmem:[#allocation2 + $0x30] sm:$0x1]
    %v33 = vld [vmem:[#allocation2 + $0x38] sm:$0xff]
    %v34 = vld [vmem:[#allocation2 + $0x40] sm:$0xff]
    %v35 = vld [vmem:[#allocation2 + $0x48] sm:$0xff]
    %v36 = vld [vmem:[#allocation2 + $0x50] sm:$0xff]
    %v37 = vld [vmem:[#allocation2 + $0x58] sm:$0x1]
    %v38 = vld [vmem:[#allocation2 + $0x60] sm:$0xff]
    %v39 = vld [vmem:[#allocation2 + $0x68] sm:$0xff]
    %v40 = vld [vmem:[#allocation2 + $0x70] sm:$0x1]
    %v41 = vld [vmem:[#allocation2 + $0x78] sm:$0xff]
    %v42 = vld [vmem:[#allocation2 + $0x80] sm:$0xff]
    %v43 = vld [vmem:[#allocation2 + $0x88] sm:$0xff]
    %v44 = vld [vmem:[#allocation2 + $0x90] sm:$0xff]
    %v45 = vld [vmem:[#allocation2 + $0x98] sm:$0x1]
    %v46 = vld [vmem:[#allocation2 + $0xa0] sm:$0xff]
    %v47 = vld [vmem:[#allocation2 + $0xa8] sm:$0xff]
    %v48 = vld [vmem:[#allocation2 + $0xb0] sm:$0xff]
    %v49 = vld [vmem:[#allocation2 + $0xb8] sm:$0xff]
    %v50 = vld [vmem:[#allocation2 + $0xc0] sm:$0x1]
    %v51 = vld [vmem:[#allocation2 + $0xc8] sm:$0xff]
    %v52 = vld [vmem:[#allocation2 + $0xd0] sm:$0xf]
    %v53 = vld [vmem:[#allocation2 + $0xd8] sm:$0x1]
    %v54 = vld [vmem:[#allocation2 + $0xe0] sm:$0xff]
    %v55 = vld [vmem:[#allocation2 + $0xe8] sm:$0xff]
    %v56 = vld [vmem:[#allocation2 + $0xf0] sm:$0xff]
    %v57 = vld [vmem:[#allocation2 + $0xf8] sm:$0xff]
    %v58 = vld [vmem:[#allocation2 + $0x100] sm:$0xff]
    %v59 = vld [vmem:[#allocation2 + $0x108] sm:$0xff]
    %v60 = vld [vmem:[#allocation2 + $0x110] sm:$0xff]
    %v61 = vld [vmem:[#allocation2 + $0x118] sm:$0xff]
    %v62 = vld [vmem:[#allocation2 + $0x120] sm:$0x1]
    %v63 = vld [vmem:[%s0] sm:$0xff]
    %v64 = vlaneseq
    %v65 = vshrl.u32 %v64, 7
    %v66 = vsub.s32 0, %v65
    %v67 = vrot.slane %v27, %v66
    %vm68 = vcmask 31744
    %v70 = vsel %vm68, %v63, 0
    %vm72 = vcmask 1043456
    %v74 = vsel %vm72, %v26, 0
    %76 = vmatprep.subr.mxu0 0.0
    %77 = vmatpush1.msra.mxu0 0.0
    %78 = vmatprep.subr.mxu0 0.0
    %79 = vmatpush1.msra.mxu0 0.0
    %80 = vmatprep.subr.mxu0 0.0
    %81 = vmatpush1.msra.mxu0 0.0
    %82 = vmatprep.subr.mxu0 0.0
    %83 = vmatpush1.msra.mxu0 0.0
    %84 = vmatprep.subr.mxu0 0.0
    %85 = vmatpush1.msra.mxu0 0.0
    %86 = vmatprep.subr.mxu0 0.0
    %87 = vmatpush1.msra.mxu0 0.0
    %88 = vmatprep.subr.mxu0 0.0
    %89 = vmatpush1.msra.mxu0 0.0
    %90 = vmatprep.subr.mxu0 0.0
    %91 = vmatpush1.msra.mxu0 0.0
    %92 = vmatprep.subr.mxu0 0.0
    %93 = vmatpush1.msra.mxu0 0.0
    %94 = vmatprep.subr.mxu0 0.0
    %95 = vmatpush1.msra.mxu0 0.0
    %96 = vmatprep.subr.mxu0 0.0
    %97 = vmatpush1.msra.mxu0 0.0
    %98 = vmatprep.subr.mxu0 0.0
    %99 = vmatpush1.msra.mxu0 0.0
    %100 = vmatprep.subr.mxu0 0.0
    %101 = vmatpush1.msra.mxu0 0.0
    %102 = vmatprep.subr.mxu0 0.0
    %103 = vmatpush1.msra.mxu0 0.0
    %104 = vmatprep.subr.mxu0 0.0
    %105 = vmatpush1.msra.mxu0 0.0
    %106 = vmatprep.subr.mxu0 0.0
    %107 = vmatpush1.msra.mxu0 %v74
    %108 = vmatprep.subr.mxu0 0.0
    %109 = vmatpush2.msra.mxu0 0.0
    %110 = vmatprep.subr.mxu0 0.0
    %111 = vmatpush2.msra.mxu0 0.0
    %112 = vmatprep.subr.mxu0 0.0
    %113 = vmatpush2.msra.mxu0 0.0
    %114 = vmatprep.subr.mxu0 0.0
    %115 = vmatpush2.msra.mxu0 0.0
    %116 = vmatprep.subr.mxu0 0.0
    %117 = vmatpush2.msra.mxu0 0.0
    %118 = vmatprep.subr.mxu0 0.0
    %119 = vmatpush2.msra.mxu0 0.0
    %120 = vmatprep.subr.mxu0 0.0
    %121 = vmatpush2.msra.mxu0 0.0
    %122 = vmatprep.subr.mxu0 0.0
    %123 = vmatpush2.msra.mxu0 0.0
    %124 = vmatprep.subr.mxu0 0.0
    %125 = vmatpush2.msra.mxu0 0.0
    %126 = vmatprep.subr.mxu0 0.0
    %127 = vmatpush2.msra.mxu0 0.0
    %128 = vmatprep.subr.mxu0 0.0
    %129 = vmatpush2.msra.mxu0 0.0
    %130 = vmatprep.subr.mxu0 0.0
    %131 = vmatpush2.msra.mxu0 0.0
    %132 = vmatprep.subr.mxu0 0.0
    %133 = vmatpush2.msra.mxu0 0.0
    %134 = vmatprep.subr.mxu0 0.0
    %135 = vmatpush2.msra.mxu0 0.0
    %136 = vmatprep.subr.mxu0 0.0
    %137 = vmatpush2.msra.mxu0 0.0
    %138 = vmatprep.subr.mxu0 0.0
    %139 = vmatpush2.msra.mxu0 0.0
    %140 = vmatprep.mubr.f32.mxu0 0.0
    %141 = vmatmul.mubr.f32.gmra.mxu0 %v70
    %v142 = vpop.f32.mrf.mxu0
    %v143 = vadd.f32 %v67, %v142
    %v144 = vpop.f32.mrf.mxu0
    %145 = vdwg.mxu0
    %v146 = vmax.f32 %v143, 0.0
    %v147 = vlaneseq
    %v148 = vshrl.u32 %v147, 7
    %v149 = vsub.s32 0, %v148
    %v150 = vrot.slane %v32, %v149
    %vm151 = vcmask 261120
    %v153 = vsel %vm151, %v146, 0
    %155 = vmatprep.subr.mxu0 0.0
    %156 = vmatpush1.msra.mxu0 0.0
    %157 = vmatprep.subr.mxu0 0.0
    %158 = vmatpush1.msra.mxu0 0.0
    %159 = vmatprep.subr.mxu0 0.0
    %160 = vmatpush1.msra.mxu0 0.0
    %161 = vmatprep.subr.mxu0 0.0
    %162 = vmatpush1.msra.mxu0 0.0
    %163 = vmatprep.subr.mxu0 0.0
    %164 = vmatpush1.msra.mxu0 0.0
    %165 = vmatprep.subr.mxu0 0.0
    %166 = vmatpush1.msra.mxu0 0.0
    %167 = vmatprep.subr.mxu0 0.0
    %168 = vmatpush1.msra.mxu0 0.0
    %169 = vmatprep.subr.mxu0 0.0
    %170 = vmatpush1.msra.mxu0 0.0
    %171 = vmatprep.subr.mxu0 0.0
    %172 = vmatpush1.msra.mxu0 0.0
    %173 = vmatprep.subr.mxu0 0.0
    %174 = vmatpush1.msra.mxu0 0.0
    %175 = vmatprep.subr.mxu0 0.0
    %176 = vmatpush1.msra.mxu0 0.0
    %177 = vmatprep.subr.mxu0 0.0
    %178 = vmatpush1.msra.mxu0 0.0
    %179 = vmatprep.subr.mxu0 0.0
    %180 = vmatpush1.msra.mxu0 %v31
    %181 = vmatprep.subr.mxu0 0.0
    %182 = vmatpush1.msra.mxu0 %v30
    %183 = vmatprep.subr.mxu0 0.0
    %184 = vmatpush1.msra.mxu0 %v29
    %185 = vmatprep.subr.mxu0 0.0
    %186 = vmatpush1.msra.mxu0 %v28
    %187 = vmatprep.subr.mxu0 0.0
    %188 = vmatpush2.msra.mxu0 0.0
    %189 = vmatprep.subr.mxu0 0.0
    %190 = vmatpush2.msra.mxu0 0.0
    %191 = vmatprep.subr.mxu0 0.0
    %192 = vmatpush2.msra.mxu0 0.0
    %193 = vmatprep.subr.mxu0 0.0
    %194 = vmatpush2.msra.mxu0 0.0
    %195 = vmatprep.subr.mxu0 0.0
    %196 = vmatpush2.msra.mxu0 0.0
    %197 = vmatprep.subr.mxu0 0.0
    %198 = vmatpush2.msra.mxu0 0.0
    %199 = vmatprep.subr.mxu0 0.0
    %200 = vmatpush2.msra.mxu0 0.0
    %201 = vmatprep.subr.mxu0 0.0
    %202 = vmatpush2.msra.mxu0 0.0
    %203 = vmatprep.subr.mxu0 0.0
    %204 = vmatpush2.msra.mxu0 0.0
    %205 = vmatprep.subr.mxu0 0.0
    %206 = vmatpush2.msra.mxu0 0.0
    %207 = vmatprep.subr.mxu0 0.0
    %208 = vmatpush2.msra.mxu0 0.0
    %209 = vmatprep.subr.mxu0 0.0
    %210 = vmatpush2.msra.mxu0 0.0
    %211 = vmatprep.subr.mxu0 0.0
    %212 = vmatpush2.msra.mxu0 0.0
    %213 = vmatprep.subr.mxu0 0.0
    %214 = vmatpush2.msra.mxu0 0.0
    %215 = vmatprep.subr.mxu0 0.0
    %216 = vmatpush2.msra.mxu0 0.0
    %217 = vmatprep.subr.mxu0 0.0
    %218 = vmatpush2.msra.mxu0 0.0
    %219 = vmatprep.mubr.f32.mxu0 0.0
    %220 = vmatmul.mubr.f32.gmra.mxu0 %v153
    %v221 = vpop.f32.mrf.mxu0
    %v222 = vadd.f32 %v150, %v221
    %v223 = vpop.f32.mrf.mxu0
    %224 = vdwg.mxu0
    %v225 = vmax.f32 %v222, 0.0
    %v226 = vlaneseq
    %v227 = vshrl.u32 %v226, 7
    %v228 = vsub.s32 0, %v227
    %v229 = vrot.slane %v37, %v228
    %v231 = vsel %vm151, %v225, 0
    %233 = vmatprep.subr.mxu0 0.0
    %234 = vmatpush1.msra.mxu0 0.0
    %235 = vmatprep.subr.mxu0 0.0
    %236 = vmatpush1.msra.mxu0 0.0
    %237 = vmatprep.subr.mxu0 0.0
    %238 = vmatpush1.msra.mxu0 0.0
    %239 = vmatprep.subr.mxu0 0.0
    %240 = vmatpush1.msra.mxu0 0.0
    %241 = vmatprep.subr.mxu0 0.0
    %242 = vmatpush1.msra.mxu0 0.0
    %243 = vmatprep.subr.mxu0 0.0
    %244 = vmatpush1.msra.mxu0 0.0
    %245 = vmatprep.subr.mxu0 0.0
    %246 = vmatpush1.msra.mxu0 0.0
    %247 = vmatprep.subr.mxu0 0.0
    %248 = vmatpush1.msra.mxu0 0.0
    %249 = vmatprep.subr.mxu0 0.0
    %250 = vmatpush1.msra.mxu0 0.0
    %251 = vmatprep.subr.mxu0 0.0
    %252 = vmatpush1.msra.mxu0 0.0
    %253 = vmatprep.subr.mxu0 0.0
    %254 = vmatpush1.msra.mxu0 0.0
    %255 = vmatprep.subr.mxu0 0.0
    %256 = vmatpush1.msra.mxu0 0.0
    %257 = vmatprep.subr.mxu0 0.0
    %258 = vmatpush1.msra.mxu0 %v36
    %259 = vmatprep.subr.mxu0 0.0
    %260 = vmatpush1.msra.mxu0 %v35
    %261 = vmatprep.subr.mxu0 0.0
    %262 = vmatpush1.msra.mxu0 %v34
    %263 = vmatprep.subr.mxu0 0.0
    %264 = vmatpush1.msra.mxu0 %v33
    %265 = vmatprep.subr.mxu0 0.0
    %266 = vmatpush2.msra.mxu0 0.0
    %267 = vmatprep.subr.mxu0 0.0
    %268 = vmatpush2.msra.mxu0 0.0
    %269 = vmatprep.subr.mxu0 0.0
    %270 = vmatpush2.msra.mxu0 0.0
    %271 = vmatprep.subr.mxu0 0.0
    %272 = vmatpush2.msra.mxu0 0.0
    %273 = vmatprep.subr.mxu0 0.0
    %274 = vmatpush2.msra.mxu0 0.0
    %275 = vmatprep.subr.mxu0 0.0
    %276 = vmatpush2.msra.mxu0 0.0
    %277 = vmatprep.subr.mxu0 0.0
    %278 = vmatpush2.msra.mxu0 0.0
    %279 = vmatprep.subr.mxu0 0.0
    %280 = vmatpush2.msra.mxu0 0.0
    %281 = vmatprep.subr.mxu0 0.0
    %282 = vmatpush2.msra.mxu0 0.0
    %283 = vmatprep.subr.mxu0 0.0
    %284 = vmatpush2.msra.mxu0 0.0
    %285 = vmatprep.subr.mxu0 0.0
    %286 = vmatpush2.msra.mxu0 0.0
    %287 = vmatprep.subr.mxu0 0.0
    %288 = vmatpush2.msra.mxu0 0.0
    %289 = vmatprep.subr.mxu0 0.0
    %290 = vmatpush2.msra.mxu0 0.0
    %291 = vmatprep.subr.mxu0 0.0
    %292 = vmatpush2.msra.mxu0 0.0
    %293 = vmatprep.subr.mxu0 0.0
    %294 = vmatpush2.msra.mxu0 0.0
    %295 = vmatprep.subr.mxu0 0.0
    %296 = vmatpush2.msra.mxu0 0.0
    %297 = vmatprep.mubr.f32.mxu0 0.0
    %298 = vmatmul.mubr.f32.gmra.mxu0 %v231
    %v299 = vpop.f32.mrf.mxu0
    %v300 = vadd.f32 %v229, %v299
    %v301 = vpop.f32.mrf.mxu0
    %302 = vdwg.mxu0
    %v303 = vmax.f32 %v300, 0.0
    %v304 = vlaneseq
    %v305 = vshrl.u32 %v304, 7
    %v306 = vsub.s32 0, %v305
    %v307 = vrot.slane %v40, %v306
    %vm308 = vcmask 130048
    %v310 = vsel %vm308, %v303, 0
    %312 = vmatprep.subr.mxu0 0.0
    %313 = vmatpush1.msra.mxu0 0.0
    %314 = vmatprep.subr.mxu0 0.0
    %315 = vmatpush1.msra.mxu0 0.0
    %316 = vmatprep.subr.mxu0 0.0
    %317 = vmatpush1.msra.mxu0 0.0
    %318 = vmatprep.subr.mxu0 0.0
    %319 = vmatpush1.msra.mxu0 0.0
    %320 = vmatprep.subr.mxu0 0.0
    %321 = vmatpush1.msra.mxu0 0.0
    %322 = vmatprep.subr.mxu0 0.0
    %323 = vmatpush1.msra.mxu0 0.0
    %324 = vmatprep.subr.mxu0 0.0
    %325 = vmatpush1.msra.mxu0 0.0
    %326 = vmatprep.subr.mxu0 0.0
    %327 = vmatpush1.msra.mxu0 0.0
    %328 = vmatprep.subr.mxu0 0.0
    %329 = vmatpush1.msra.mxu0 0.0
    %330 = vmatprep.subr.mxu0 0.0
    %331 = vmatpush1.msra.mxu0 0.0
    %332 = vmatprep.subr.mxu0 0.0
    %333 = vmatpush1.msra.mxu0 0.0
    %334 = vmatprep.subr.mxu0 0.0
    %335 = vmatpush1.msra.mxu0 0.0
    %336 = vmatprep.subr.mxu0 0.0
    %337 = vmatpush1.msra.mxu0 0.0
    %338 = vmatprep.subr.mxu0 0.0
    %339 = vmatpush1.msra.mxu0 0.0
    %340 = vmatprep.subr.mxu0 0.0
    %341 = vmatpush1.msra.mxu0 %v39
    %342 = vmatprep.subr.mxu0 0.0
    %343 = vmatpush1.msra.mxu0 %v38
    %344 = vmatprep.subr.mxu0 0.0
    %345 = vmatpush2.msra.mxu0 0.0
    %346 = vmatprep.subr.mxu0 0.0
    %347 = vmatpush2.msra.mxu0 0.0
    %348 = vmatprep.subr.mxu0 0.0
    %349 = vmatpush2.msra.mxu0 0.0
    %350 = vmatprep.subr.mxu0 0.0
    %351 = vmatpush2.msra.mxu0 0.0
    %352 = vmatprep.subr.mxu0 0.0
    %353 = vmatpush2.msra.mxu0 0.0
    %354 = vmatprep.subr.mxu0 0.0
    %355 = vmatpush2.msra.mxu0 0.0
    %356 = vmatprep.subr.mxu0 0.0
    %357 = vmatpush2.msra.mxu0 0.0
    %358 = vmatprep.subr.mxu0 0.0
    %359 = vmatpush2.msra.mxu0 0.0
    %360 = vmatprep.subr.mxu0 0.0
    %361 = vmatpush2.msra.mxu0 0.0
    %362 = vmatprep.subr.mxu0 0.0
    %363 = vmatpush2.msra.mxu0 0.0
    %364 = vmatprep.subr.mxu0 0.0
    %365 = vmatpush2.msra.mxu0 0.0
    %366 = vmatprep.subr.mxu0 0.0
    %367 = vmatpush2.msra.mxu0 0.0
    %368 = vmatprep.subr.mxu0 0.0
    %369 = vmatpush2.msra.mxu0 0.0
    %370 = vmatprep.subr.mxu0 0.0
    %371 = vmatpush2.msra.mxu0 0.0
    %372 = vmatprep.subr.mxu0 0.0
    %373 = vmatpush2.msra.mxu0 0.0
    %374 = vmatprep.subr.mxu0 0.0
    %375 = vmatpush2.msra.mxu0 0.0
    %376 = vmatprep.mubr.f32.mxu0 0.0
    %377 = vmatmul.mubr.f32.gmra.mxu0 %v310
    %v378 = vpop.f32.mrf.mxu0
    %v379 = vadd.f32 %v307, %v378
    %v380 = vpop.f32.mrf.mxu0
    %381 = vdwg.mxu0
    %v382 = vmax.f32 %v379, 0.0
    %v383 = vlaneseq
    %v384 = vshrl.u32 %v383, 7
    %v385 = vsub.s32 0, %v384
    %v386 = vrot.slane %v45, %v385
    %v388 = vsel %vm151, %v382, 0
    %390 = vmatprep.subr.mxu0 0.0
    %391 = vmatpush1.msra.mxu0 0.0
    %392 = vmatprep.subr.mxu0 0.0
    %393 = vmatpush1.msra.mxu0 0.0
    %394 = vmatprep.subr.mxu0 0.0
    %395 = vmatpush1.msra.mxu0 0.0
    %396 = vmatprep.subr.mxu0 0.0
    %397 = vmatpush1.msra.mxu0 0.0
    %398 = vmatprep.subr.mxu0 0.0
    %399 = vmatpush1.msra.mxu0 0.0
    %400 = vmatprep.subr.mxu0 0.0
    %401 = vmatpush1.msra.mxu0 0.0
    %402 = vmatprep.subr.mxu0 0.0
    %403 = vmatpush1.msra.mxu0 0.0
    %404 = vmatprep.subr.mxu0 0.0
    %405 = vmatpush1.msra.mxu0 0.0
    %406 = vmatprep.subr.mxu0 0.0
    %407 = vmatpush1.msra.mxu0 0.0
    %408 = vmatprep.subr.mxu0 0.0
    %409 = vmatpush1.msra.mxu0 0.0
    %410 = vmatprep.subr.mxu0 0.0
    %411 = vmatpush1.msra.mxu0 0.0
    %412 = vmatprep.subr.mxu0 0.0
    %413 = vmatpush1.msra.mxu0 0.0
    %414 = vmatprep.subr.mxu0 0.0
    %415 = vmatpush1.msra.mxu0 %v44
    %416 = vmatprep.subr.mxu0 0.0
    %417 = vmatpush1.msra.mxu0 %v43
    %418 = vmatprep.subr.mxu0 0.0
    %419 = vmatpush1.msra.mxu0 %v42
    %420 = vmatprep.subr.mxu0 0.0
    %421 = vmatpush1.msra.mxu0 %v41
    %422 = vmatprep.subr.mxu0 0.0
    %423 = vmatpush2.msra.mxu0 0.0
    %424 = vmatprep.subr.mxu0 0.0
    %425 = vmatpush2.msra.mxu0 0.0
    %426 = vmatprep.subr.mxu0 0.0
    %427 = vmatpush2.msra.mxu0 0.0
    %428 = vmatprep.subr.mxu0 0.0
    %429 = vmatpush2.msra.mxu0 0.0
    %430 = vmatprep.subr.mxu0 0.0
    %431 = vmatpush2.msra.mxu0 0.0
    %432 = vmatprep.subr.mxu0 0.0
    %433 = vmatpush2.msra.mxu0 0.0
    %434 = vmatprep.subr.mxu0 0.0
    %435 = vmatpush2.msra.mxu0 0.0
    %436 = vmatprep.subr.mxu0 0.0
    %437 = vmatpush2.msra.mxu0 0.0
    %438 = vmatprep.subr.mxu0 0.0
    %439 = vmatpush2.msra.mxu0 0.0
    %440 = vmatprep.subr.mxu0 0.0
    %441 = vmatpush2.msra.mxu0 0.0
    %442 = vmatprep.subr.mxu0 0.0
    %443 = vmatpush2.msra.mxu0 0.0
    %444 = vmatprep.subr.mxu0 0.0
    %445 = vmatpush2.msra.mxu0 0.0
    %446 = vmatprep.subr.mxu0 0.0
    %447 = vmatpush2.msra.mxu0 0.0
    %448 = vmatprep.subr.mxu0 0.0
    %449 = vmatpush2.msra.mxu0 0.0
    %450 = vmatprep.subr.mxu0 0.0
    %451 = vmatpush2.msra.mxu0 0.0
    %452 = vmatprep.subr.mxu0 0.0
    %453 = vmatpush2.msra.mxu0 0.0
    %454 = vmatprep.mubr.f32.mxu0 0.0
    %455 = vmatmul.mubr.f32.gmra.mxu0 %v388
    %v456 = vpop.f32.mrf.mxu0
    %v457 = vadd.f32 %v386, %v456
    %v458 = vpop.f32.mrf.mxu0
    %459 = vdwg.mxu0
    %v460 = vmax.f32 %v457, 0.0
    %v461 = vlaneseq
    %v462 = vshrl.u32 %v461, 7
    %v463 = vsub.s32 0, %v462
    %v464 = vrot.slane %v50, %v463
    %v466 = vsel %vm151, %v460, 0
    %468 = vmatprep.subr.mxu0 0.0
    %469 = vmatpush1.msra.mxu0 0.0
    %470 = vmatprep.subr.mxu0 0.0
    %471 = vmatpush1.msra.mxu0 0.0
    %472 = vmatprep.subr.mxu0 0.0
    %473 = vmatpush1.msra.mxu0 0.0
    %474 = vmatprep.subr.mxu0 0.0
    %475 = vmatpush1.msra.mxu0 0.0
    %476 = vmatprep.subr.mxu0 0.0
    %477 = vmatpush1.msra.mxu0 0.0
    %478 = vmatprep.subr.mxu0 0.0
    %479 = vmatpush1.msra.mxu0 0.0
    %480 = vmatprep.subr.mxu0 0.0
    %481 = vmatpush1.msra.mxu0 0.0
    %482 = vmatprep.subr.mxu0 0.0
    %483 = vmatpush1.msra.mxu0 0.0
    %484 = vmatprep.subr.mxu0 0.0
    %485 = vmatpush1.msra.mxu0 0.0
    %486 = vmatprep.subr.mxu0 0.0
    %487 = vmatpush1.msra.mxu0 0.0
    %488 = vmatprep.subr.mxu0 0.0
    %489 = vmatpush1.msra.mxu0 0.0
    %490 = vmatprep.subr.mxu0 0.0
    %491 = vmatpush1.msra.mxu0 0.0
    %492 = vmatprep.subr.mxu0 0.0
    %493 = vmatpush1.msra.mxu0 %v49
    %494 = vmatprep.subr.mxu0 0.0
    %495 = vmatpush1.msra.mxu0 %v48
    %496 = vmatprep.subr.mxu0 0.0
    %497 = vmatpush1.msra.mxu0 %v47
    %498 = vmatprep.subr.mxu0 0.0
    %499 = vmatpush1.msra.mxu0 %v46
    %500 = vmatprep.subr.mxu0 0.0
    %501 = vmatpush2.msra.mxu0 0.0
    %502 = vmatprep.subr.mxu0 0.0
    %503 = vmatpush2.msra.mxu0 0.0
    %504 = vmatprep.subr.mxu0 0.0
    %505 = vmatpush2.msra.mxu0 0.0
    %506 = vmatprep.subr.mxu0 0.0
    %507 = vmatpush2.msra.mxu0 0.0
    %508 = vmatprep.subr.mxu0 0.0
    %509 = vmatpush2.msra.mxu0 0.0
    %510 = vmatprep.subr.mxu0 0.0
    %511 = vmatpush2.msra.mxu0 0.0
    %512 = vmatprep.subr.mxu0 0.0
    %513 = vmatpush2.msra.mxu0 0.0
    %514 = vmatprep.subr.mxu0 0.0
    %515 = vmatpush2.msra.mxu0 0.0
    %516 = vmatprep.subr.mxu0 0.0
    %517 = vmatpush2.msra.mxu0 0.0
    %518 = vmatprep.subr.mxu0 0.0
    %519 = vmatpush2.msra.mxu0 0.0
    %520 = vmatprep.subr.mxu0 0.0
    %521 = vmatpush2.msra.mxu0 0.0
    %522 = vmatprep.subr.mxu0 0.0
    %523 = vmatpush2.msra.mxu0 0.0
    %524 = vmatprep.subr.mxu0 0.0
    %525 = vmatpush2.msra.mxu0 0.0
    %526 = vmatprep.subr.mxu0 0.0
    %527 = vmatpush2.msra.mxu0 0.0
    %528 = vmatprep.subr.mxu0 0.0
    %529 = vmatpush2.msra.mxu0 0.0
    %530 = vmatprep.subr.mxu0 0.0
    %531 = vmatpush2.msra.mxu0 0.0
    %532 = vmatprep.mubr.f32.mxu0 0.0
    %533 = vmatmul.mubr.f32.gmra.mxu0 %v466
    %v534 = vpop.f32.mrf.mxu0
    %v535 = vadd.f32 %v464, %v534
    %v536 = vpop.f32.mrf.mxu0
    %537 = vdwg.mxu0
    %v539 = vsel %vm308, %v51, 0
    %541 = vmatprep.subr.mxu0 0.0
    %542 = vmatpush1.msra.mxu0 0.0
    %543 = vmatprep.subr.mxu0 0.0
    %544 = vmatpush1.msra.mxu0 0.0
    %545 = vmatprep.subr.mxu0 0.0
    %546 = vmatpush1.msra.mxu0 0.0
    %547 = vmatprep.subr.mxu0 0.0
    %548 = vmatpush1.msra.mxu0 0.0
    %549 = vmatprep.subr.mxu0 0.0
    %550 = vmatpush1.msra.mxu0 0.0
    %551 = vmatprep.subr.mxu0 0.0
    %552 = vmatpush1.msra.mxu0 0.0
    %553 = vmatprep.subr.mxu0 0.0
    %554 = vmatpush1.msra.mxu0 0.0
    %555 = vmatprep.subr.mxu0 0.0
    %556 = vmatpush1.msra.mxu0 0.0
    %557 = vmatprep.subr.mxu0 0.0
    %558 = vmatpush1.msra.mxu0 0.0
    %559 = vmatprep.subr.mxu0 0.0
    %560 = vmatpush1.msra.mxu0 0.0
    %561 = vmatprep.subr.mxu0 0.0
    %562 = vmatpush1.msra.mxu0 0.0
    %563 = vmatprep.subr.mxu0 0.0
    %564 = vmatpush1.msra.mxu0 0.0
    %565 = vmatprep.subr.mxu0 0.0
    %566 = vmatpush1.msra.mxu0 0.0
    %567 = vmatprep.subr.mxu0 0.0
    %568 = vmatpush1.msra.mxu0 0.0
    %569 = vmatprep.subr.mxu0 0.0
    %570 = vmatpush1.msra.mxu0 %v39
    %571 = vmatprep.subr.mxu0 0.0
    %572 = vmatpush1.msra.mxu0 %v38
    %573 = vmatprep.subr.mxu0 0.0
    %574 = vmatpush2.msra.mxu0 0.0
    %575 = vmatprep.subr.mxu0 0.0
    %576 = vmatpush2.msra.mxu0 0.0
    %577 = vmatprep.subr.mxu0 0.0
    %578 = vmatpush2.msra.mxu0 0.0
    %579 = vmatprep.subr.mxu0 0.0
    %580 = vmatpush2.msra.mxu0 0.0
    %581 = vmatprep.subr.mxu0 0.0
    %582 = vmatpush2.msra.mxu0 0.0
    %583 = vmatprep.subr.mxu0 0.0
    %584 = vmatpush2.msra.mxu0 0.0
    %585 = vmatprep.subr.mxu0 0.0
    %586 = vmatpush2.msra.mxu0 0.0
    %587 = vmatprep.subr.mxu0 0.0
    %588 = vmatpush2.msra.mxu0 0.0
    %589 = vmatprep.subr.mxu0 0.0
    %590 = vmatpush2.msra.mxu0 0.0
    %591 = vmatprep.subr.mxu0 0.0
    %592 = vmatpush2.msra.mxu0 0.0
    %593 = vmatprep.subr.mxu0 0.0
    %594 = vmatpush2.msra.mxu0 0.0
    %595 = vmatprep.subr.mxu0 0.0
    %596 = vmatpush2.msra.mxu0 0.0
    %597 = vmatprep.subr.mxu0 0.0
    %598 = vmatpush2.msra.mxu0 0.0
    %599 = vmatprep.subr.mxu0 0.0
    %600 = vmatpush2.msra.mxu0 0.0
    %601 = vmatprep.subr.mxu0 0.0
    %602 = vmatpush2.msra.mxu0 0.0
    %603 = vmatprep.subr.mxu0 0.0
    %604 = vmatpush2.msra.mxu0 0.0
    %605 = vmatprep.mubr.f32.mxu0 0.0
    %606 = vmatmul.mubr.f32.gmra.mxu0 %v539
    %v607 = vpop.f32.mrf.mxu0
    %v608 = vadd.f32 %v307, %v607
    %v609 = vpop.f32.mrf.mxu0
    %610 = vdwg.mxu0
    %v611 = vmax.f32 %v608, 0.0
    %v613 = vsel %vm151, %v611, 0
    %615 = vmatprep.subr.mxu0 0.0
    %616 = vmatpush1.msra.mxu0 0.0
    %617 = vmatprep.subr.mxu0 0.0
    %618 = vmatpush1.msra.mxu0 0.0
    %619 = vmatprep.subr.mxu0 0.0
    %620 = vmatpush1.msra.mxu0 0.0
    %621 = vmatprep.subr.mxu0 0.0
    %622 = vmatpush1.msra.mxu0 0.0
    %623 = vmatprep.subr.mxu0 0.0
    %624 = vmatpush1.msra.mxu0 0.0
    %625 = vmatprep.subr.mxu0 0.0
    %626 = vmatpush1.msra.mxu0 0.0
    %627 = vmatprep.subr.mxu0 0.0
    %628 = vmatpush1.msra.mxu0 0.0
    %629 = vmatprep.subr.mxu0 0.0
    %630 = vmatpush1.msra.mxu0 0.0
    %631 = vmatprep.subr.mxu0 0.0
    %632 = vmatpush1.msra.mxu0 0.0
    %633 = vmatprep.subr.mxu0 0.0
    %634 = vmatpush1.msra.mxu0 0.0
    %635 = vmatprep.subr.mxu0 0.0
    %636 = vmatpush1.msra.mxu0 0.0
    %637 = vmatprep.subr.mxu0 0.0
    %638 = vmatpush1.msra.mxu0 0.0
    %639 = vmatprep.subr.mxu0 0.0
    %640 = vmatpush1.msra.mxu0 %v44
    %641 = vmatprep.subr.mxu0 0.0
    %642 = vmatpush1.msra.mxu0 %v43
    %643 = vmatprep.subr.mxu0 0.0
    %644 = vmatpush1.msra.mxu0 %v42
    %645 = vmatprep.subr.mxu0 0.0
    %646 = vmatpush1.msra.mxu0 %v41
    %647 = vmatprep.subr.mxu0 0.0
    %648 = vmatpush2.msra.mxu0 0.0
    %649 = vmatprep.subr.mxu0 0.0
    %650 = vmatpush2.msra.mxu0 0.0
    %651 = vmatprep.subr.mxu0 0.0
    %652 = vmatpush2.msra.mxu0 0.0
    %653 = vmatprep.subr.mxu0 0.0
    %654 = vmatpush2.msra.mxu0 0.0
    %655 = vmatprep.subr.mxu0 0.0
    %656 = vmatpush2.msra.mxu0 0.0
    %657 = vmatprep.subr.mxu0 0.0
    %658 = vmatpush2.msra.mxu0 0.0
    %659 = vmatprep.subr.mxu0 0.0
    %660 = vmatpush2.msra.mxu0 0.0
    %661 = vmatprep.subr.mxu0 0.0
    %662 = vmatpush2.msra.mxu0 0.0
    %663 = vmatprep.subr.mxu0 0.0
    %664 = vmatpush2.msra.mxu0 0.0
    %665 = vmatprep.subr.mxu0 0.0
    %666 = vmatpush2.msra.mxu0 0.0
    %667 = vmatprep.subr.mxu0 0.0
    %668 = vmatpush2.msra.mxu0 0.0
    %669 = vmatprep.subr.mxu0 0.0
    %670 = vmatpush2.msra.mxu0 0.0
    %671 = vmatprep.subr.mxu0 0.0
    %672 = vmatpush2.msra.mxu0 0.0
    %673 = vmatprep.subr.mxu0 0.0
    %674 = vmatpush2.msra.mxu0 0.0
    %675 = vmatprep.subr.mxu0 0.0
    %676 = vmatpush2.msra.mxu0 0.0
    %677 = vmatprep.subr.mxu0 0.0
    %678 = vmatpush2.msra.mxu0 0.0
    %679 = vmatprep.mubr.f32.mxu0 0.0
    %680 = vmatmul.mubr.f32.gmra.mxu0 %v613
    %v681 = vpop.f32.mrf.mxu0
    %v682 = vadd.f32 %v386, %v681
    %v683 = vpop.f32.mrf.mxu0
    %684 = vdwg.mxu0
    %v685 = vmax.f32 %v682, 0.0
    %v687 = vsel %vm151, %v685, 0
    %689 = vmatprep.subr.mxu0 0.0
    %690 = vmatpush1.msra.mxu0 0.0
    %691 = vmatprep.subr.mxu0 0.0
    %692 = vmatpush1.msra.mxu0 0.0
    %693 = vmatprep.subr.mxu0 0.0
    %694 = vmatpush1.msra.mxu0 0.0
    %695 = vmatprep.subr.mxu0 0.0
    %696 = vmatpush1.msra.mxu0 0.0
    %697 = vmatprep.subr.mxu0 0.0
    %698 = vmatpush1.msra.mxu0 0.0
    %699 = vmatprep.subr.mxu0 0.0
    %700 = vmatpush1.msra.mxu0 0.0
    %701 = vmatprep.subr.mxu0 0.0
    %702 = vmatpush1.msra.mxu0 0.0
    %703 = vmatprep.subr.mxu0 0.0
    %704 = vmatpush1.msra.mxu0 0.0
    %705 = vmatprep.subr.mxu0 0.0
    %706 = vmatpush1.msra.mxu0 0.0
    %707 = vmatprep.subr.mxu0 0.0
    %708 = vmatpush1.msra.mxu0 0.0
    %709 = vmatprep.subr.mxu0 0.0
    %710 = vmatpush1.msra.mxu0 0.0
    %711 = vmatprep.subr.mxu0 0.0
    %712 = vmatpush1.msra.mxu0 0.0
    %713 = vmatprep.subr.mxu0 0.0
    %714 = vmatpush1.msra.mxu0 %v49
    %715 = vmatprep.subr.mxu0 0.0
    %716 = vmatpush1.msra.mxu0 %v48
    %717 = vmatprep.subr.mxu0 0.0
    %718 = vmatpush1.msra.mxu0 %v47
    %719 = vmatprep.subr.mxu0 0.0
    %720 = vmatpush1.msra.mxu0 %v46
    %721 = vmatprep.subr.mxu0 0.0
    %722 = vmatpush2.msra.mxu0 0.0
    %723 = vmatprep.subr.mxu0 0.0
    %724 = vmatpush2.msra.mxu0 0.0
    %725 = vmatprep.subr.mxu0 0.0
    %726 = vmatpush2.msra.mxu0 0.0
    %727 = vmatprep.subr.mxu0 0.0
    %728 = vmatpush2.msra.mxu0 0.0
    %729 = vmatprep.subr.mxu0 0.0
    %730 = vmatpush2.msra.mxu0 0.0
    %731 = vmatprep.subr.mxu0 0.0
    %732 = vmatpush2.msra.mxu0 0.0
    %733 = vmatprep.subr.mxu0 0.0
    %734 = vmatpush2.msra.mxu0 0.0
    %735 = vmatprep.subr.mxu0 0.0
    %736 = vmatpush2.msra.mxu0 0.0
    %737 = vmatprep.subr.mxu0 0.0
    %738 = vmatpush2.msra.mxu0 0.0
    %739 = vmatprep.subr.mxu0 0.0
    %740 = vmatpush2.msra.mxu0 0.0
    %741 = vmatprep.subr.mxu0 0.0
    %742 = vmatpush2.msra.mxu0 0.0
    %743 = vmatprep.subr.mxu0 0.0
    %744 = vmatpush2.msra.mxu0 0.0
    %745 = vmatprep.subr.mxu0 0.0
    %746 = vmatpush2.msra.mxu0 0.0
    %747 = vmatprep.subr.mxu0 0.0
    %748 = vmatpush2.msra.mxu0 0.0
    %749 = vmatprep.subr.mxu0 0.0
    %750 = vmatpush2.msra.mxu0 0.0
    %751 = vmatprep.subr.mxu0 0.0
    %752 = vmatpush2.msra.mxu0 0.0
    %753 = vmatprep.mubr.f32.mxu0 0.0
    %754 = vmatmul.mubr.f32.gmra.mxu0 %v687
    %v755 = vpop.f32.mrf.mxu0
    %v756 = vadd.f32 %v464, %v755
    %v757 = vpop.f32.mrf.mxu0
    %758 = vdwg.mxu0
    %v759 = vlaneseq
    %v760 = vshrl.u32 %v759, 7
    %v761 = vsub.s32 0, %v760
    %v762 = vrot.slane %v53, %v761
    %v764 = vsel %vm68, %v756, 0
    %v767 = vsel %vm72, %v52, 0
    %769 = vmatprep.subr.mxu0 0.0
    %770 = vmatpush1.msra.mxu0 0.0
    %771 = vmatprep.subr.mxu0 0.0
    %772 = vmatpush1.msra.mxu0 0.0
    %773 = vmatprep.subr.mxu0 0.0
    %774 = vmatpush1.msra.mxu0 0.0
    %775 = vmatprep.subr.mxu0 0.0
    %776 = vmatpush1.msra.mxu0 0.0
    %777 = vmatprep.subr.mxu0 0.0
    %778 = vmatpush1.msra.mxu0 0.0
    %779 = vmatprep.subr.mxu0 0.0
    %780 = vmatpush1.msra.mxu0 0.0
    %781 = vmatprep.subr.mxu0 0.0
    %782 = vmatpush1.msra.mxu0 0.0
    %783 = vmatprep.subr.mxu0 0.0
    %784 = vmatpush1.msra.mxu0 0.0
    %785 = vmatprep.subr.mxu0 0.0
    %786 = vmatpush1.msra.mxu0 0.0
    %787 = vmatprep.subr.mxu0 0.0
    %788 = vmatpush1.msra.mxu0 0.0
    %789 = vmatprep.subr.mxu0 0.0
    %790 = vmatpush1.msra.mxu0 0.0
    %791 = vmatprep.subr.mxu0 0.0
    %792 = vmatpush1.msra.mxu0 0.0
    %793 = vmatprep.subr.mxu0 0.0
    %794 = vmatpush1.msra.mxu0 0.0
    %795 = vmatprep.subr.mxu0 0.0
    %796 = vmatpush1.msra.mxu0 0.0
    %797 = vmatprep.subr.mxu0 0.0
    %798 = vmatpush1.msra.mxu0 0.0
    %799 = vmatprep.subr.mxu0 0.0
    %800 = vmatpush1.msra.mxu0 %v767
    %801 = vmatprep.subr.mxu0 0.0
    %802 = vmatpush2.msra.mxu0 0.0
    %803 = vmatprep.subr.mxu0 0.0
    %804 = vmatpush2.msra.mxu0 0.0
    %805 = vmatprep.subr.mxu0 0.0
    %806 = vmatpush2.msra.mxu0 0.0
    %807 = vmatprep.subr.mxu0 0.0
    %808 = vmatpush2.msra.mxu0 0.0
    %809 = vmatprep.subr.mxu0 0.0
    %810 = vmatpush2.msra.mxu0 0.0
    %811 = vmatprep.subr.mxu0 0.0
    %812 = vmatpush2.msra.mxu0 0.0
    %813 = vmatprep.subr.mxu0 0.0
    %814 = vmatpush2.msra.mxu0 0.0
    %815 = vmatprep.subr.mxu0 0.0
    %816 = vmatpush2.msra.mxu0 0.0
    %817 = vmatprep.subr.mxu0 0.0
    %818 = vmatpush2.msra.mxu0 0.0
    %819 = vmatprep.subr.mxu0 0.0
    %820 = vmatpush2.msra.mxu0 0.0
    %821 = vmatprep.subr.mxu0 0.0
    %822 = vmatpush2.msra.mxu0 0.0
    %823 = vmatprep.subr.mxu0 0.0
    %824 = vmatpush2.msra.mxu0 0.0
    %825 = vmatprep.subr.mxu0 0.0
    %826 = vmatpush2.msra.mxu0 0.0
    %827 = vmatprep.subr.mxu0 0.0
    %828 = vmatpush2.msra.mxu0 0.0
    %829 = vmatprep.subr.mxu0 0.0
    %830 = vmatpush2.msra.mxu0 0.0
    %831 = vmatprep.subr.mxu0 0.0
    %832 = vmatpush2.msra.mxu0 0.0
    %833 = vmatprep.mubr.f32.mxu0 0.0
    %834 = vmatmul.mubr.f32.gmra.mxu0 %v764
    %v835 = vpop.f32.mrf.mxu0
    %v836 = vadd.f32 %v762, %v835
    %v837 = vpop.f32.mrf.mxu0
    %838 = vdwg.mxu0
    %v839 = vmax.f32 %v836, 0.0
    %v840 = vlaneseq
    %v841 = vshrl.u32 %v840, 7
    %v842 = vsub.s32 0, %v841
    %v843 = vrot.slane %v62, %v842
    %vm844 = vcmask 523264
    %v846 = vsel %vm844, %v839, 0
    %848 = vmatprep.subr.mxu0 0.0
    %849 = vmatpush1.msra.mxu0 0.0
    %850 = vmatprep.subr.mxu0 0.0
    %851 = vmatpush1.msra.mxu0 0.0
    %852 = vmatprep.subr.mxu0 0.0
    %853 = vmatpush1.msra.mxu0 0.0
    %854 = vmatprep.subr.mxu0 0.0
    %855 = vmatpush1.msra.mxu0 0.0
    %856 = vmatprep.subr.mxu0 0.0
    %857 = vmatpush1.msra.mxu0 0.0
    %858 = vmatprep.subr.mxu0 0.0
    %859 = vmatpush1.msra.mxu0 0.0
    %860 = vmatprep.subr.mxu0 0.0
    %861 = vmatpush1.msra.mxu0 0.0
    %862 = vmatprep.subr.mxu0 0.0
    %863 = vmatpush1.msra.mxu0 0.0
    %864 = vmatprep.subr.mxu0 0.0
    %865 = vmatpush1.msra.mxu0 %v61
    %866 = vmatprep.subr.mxu0 0.0
    %867 = vmatpush1.msra.mxu0 %v60
    %868 = vmatprep.subr.mxu0 0.0
    %869 = vmatpush1.msra.mxu0 %v59
    %870 = vmatprep.subr.mxu0 0.0
    %871 = vmatpush1.msra.mxu0 %v58
    %872 = vmatprep.subr.mxu0 0.0
    %873 = vmatpush1.msra.mxu0 %v57
    %874 = vmatprep.subr.mxu0 0.0
    %875 = vmatpush1.msra.mxu0 %v56
    %876 = vmatprep.subr.mxu0 0.0
    %877 = vmatpush1.msra.mxu0 %v55
    %878 = vmatprep.subr.mxu0 0.0
    %879 = vmatpush1.msra.mxu0 %v54
    %880 = vmatprep.subr.mxu0 0.0
    %881 = vmatpush2.msra.mxu0 0.0
    %882 = vmatprep.subr.mxu0 0.0
    %883 = vmatpush2.msra.mxu0 0.0
    %884 = vmatprep.subr.mxu0 0.0
    %885 = vmatpush2.msra.mxu0 0.0
    %886 = vmatprep.subr.mxu0 0.0
    %887 = vmatpush2.msra.mxu0 0.0
    %888 = vmatprep.subr.mxu0 0.0
    %889 = vmatpush2.msra.mxu0 0.0
    %890 = vmatprep.subr.mxu0 0.0
    %891 = vmatpush2.msra.mxu0 0.0
    %892 = vmatprep.subr.mxu0 0.0
    %893 = vmatpush2.msra.mxu0 0.0
    %894 = vmatprep.subr.mxu0 0.0
    %895 = vmatpush2.msra.mxu0 0.0
    %896 = vmatprep.subr.mxu0 0.0
    %897 = vmatpush2.msra.mxu0 0.0
    %898 = vmatprep.subr.mxu0 0.0
    %899 = vmatpush2.msra.mxu0 0.0
    %900 = vmatprep.subr.mxu0 0.0
    %901 = vmatpush2.msra.mxu0 0.0
    %902 = vmatprep.subr.mxu0 0.0
    %903 = vmatpush2.msra.mxu0 0.0
    %904 = vmatprep.subr.mxu0 0.0
    %905 = vmatpush2.msra.mxu0 0.0
    %906 = vmatprep.subr.mxu0 0.0
    %907 = vmatpush2.msra.mxu0 0.0
    %908 = vmatprep.subr.mxu0 0.0
    %909 = vmatpush2.msra.mxu0 0.0
    %910 = vmatprep.subr.mxu0 0.0
    %911 = vmatpush2.msra.mxu0 0.0
    %912 = vmatprep.mubr.f32.mxu0 0.0
    %913 = vmatmul.mubr.f32.gmra.mxu0 %v846
    %v914 = vpop.f32.mrf.mxu0
    %v915 = vadd.f32 %v843, %v914
    %v916 = vpop.f32.mrf.mxu0
    %917 = vdwg.mxu0
    %v918 = vmul.f32 %v303, %v303
    %v919 = vsel %vm308, %v918, 0.0
    %920 = vadd.xlane.f32.xlu0 %v919
    %v921 = vpop.xlane.xlu0 %920
    %v922 = vmul.f32 %v51, %v51
    %v923 = vsel %vm308, %v922, 0.0
    %924 = vadd.xlane.f32.xlu0 %v923
    %v925 = vpop.xlane.xlu0 %924
    %926 = vmatprep.subr.mxu0 0.0
    %927 = vmatpush1.xpose.msra.mxu0 0.0
    %928 = vmatprep.subr.mxu0 0.0
    %929 = vmatpush1.xpose.msra.mxu0 0.0
    %930 = vmatprep.subr.mxu0 0.0
    %931 = vmatpush1.xpose.msra.mxu0 0.0
    %932 = vmatprep.subr.mxu0 0.0
    %933 = vmatpush1.xpose.msra.mxu0 0.0
    %934 = vmatprep.subr.mxu0 0.0
    %935 = vmatpush1.xpose.msra.mxu0 0.0
    %936 = vmatprep.subr.mxu0 0.0
    %937 = vmatpush1.xpose.msra.mxu0 0.0
    %938 = vmatprep.subr.mxu0 0.0
    %939 = vmatpush1.xpose.msra.mxu0 0.0
    %940 = vmatprep.subr.mxu0 0.0
    %941 = vmatpush1.xpose.msra.mxu0 0.0
    %942 = vmatprep.subr.mxu0 0.0
    %943 = vmatpush1.xpose.msra.mxu0 0.0
    %944 = vmatprep.subr.mxu0 0.0
    %945 = vmatpush1.xpose.msra.mxu0 0.0
    %946 = vmatprep.subr.mxu0 0.0
    %947 = vmatpush1.xpose.msra.mxu0 0.0
    %948 = vmatprep.subr.mxu0 0.0
    %949 = vmatpush1.xpose.msra.mxu0 0.0
    %950 = vmatprep.subr.mxu0 0.0
    %951 = vmatpush1.xpose.msra.mxu0 0.0
    %952 = vmatprep.subr.mxu0 0.0
    %953 = vmatpush1.xpose.msra.mxu0 0.0
    %954 = vmatprep.subr.mxu0 0.0
    %955 = vmatpush1.xpose.msra.mxu0 0.0
    %956 = vmatprep.subr.mxu0 0.0
    %957 = vmatpush1.xpose.msra.mxu0 %v539
    %958 = vmatprep.subr.mxu0 0.0
    %959 = vmatpush2.xpose.msra.mxu0 0.0
    %960 = vmatprep.subr.mxu0 0.0
    %961 = vmatpush2.xpose.msra.mxu0 0.0
    %962 = vmatprep.subr.mxu0 0.0
    %963 = vmatpush2.xpose.msra.mxu0 0.0
    %964 = vmatprep.subr.mxu0 0.0
    %965 = vmatpush2.xpose.msra.mxu0 0.0
    %966 = vmatprep.subr.mxu0 0.0
    %967 = vmatpush2.xpose.msra.mxu0 0.0
    %968 = vmatprep.subr.mxu0 0.0
    %969 = vmatpush2.xpose.msra.mxu0 0.0
    %970 = vmatprep.subr.mxu0 0.0
    %971 = vmatpush2.xpose.msra.mxu0 0.0
    %972 = vmatprep.subr.mxu0 0.0
    %973 = vmatpush2.xpose.msra.mxu0 0.0
    %974 = vmatprep.subr.mxu0 0.0
    %975 = vmatpush2.xpose.msra.mxu0 0.0
    %976 = vmatprep.subr.mxu0 0.0
    %977 = vmatpush2.xpose.msra.mxu0 0.0
    %978 = vmatprep.subr.mxu0 0.0
    %979 = vmatpush2.xpose.msra.mxu0 0.0
    %980 = vmatprep.subr.mxu0 0.0
    %981 = vmatpush2.xpose.msra.mxu0 0.0
    %982 = vmatprep.subr.mxu0 0.0
    %983 = vmatpush2.xpose.msra.mxu0 0.0
    %984 = vmatprep.subr.mxu0 0.0
    %985 = vmatpush2.xpose.msra.mxu0 0.0
    %986 = vmatprep.subr.mxu0 0.0
    %987 = vmatpush2.xpose.msra.mxu0 0.0
    %988 = vmatprep.subr.mxu0 0.0
    %989 = vmatpush2.xpose.msra.mxu0 0.0
    %990 = vmatprep.mubr.f32.mxu0 0.0
    %991 = vmatmul.mubr.f32.gmra.mxu0 %v310
    %v992 = vpop.f32.mrf.mxu0
    %v993 = vadd.f32 0.0, %v992
    %v994 = vpop.f32.mrf.mxu0
    %995 = vdwg.mxu0
    %996 = vxpose.xlu0.b32.start [1/16] %v925, 128
    %997 = vxpose.xlu0.b32.cont [2/16] 0.0, 128
    %998 = vxpose.xlu0.b32.cont [3/16] 0.0, 128
    %999 = vxpose.xlu0.b32.cont [4/16] 0.0, 128
    %1000 = vxpose.xlu0.b32.cont [5/16] 0.0, 128
    %1001 = vxpose.xlu0.b32.cont [6/16] 0.0, 128
    %1002 = vxpose.xlu0.b32.cont [7/16] 0.0, 128
    %1003 = vxpose.xlu0.b32.cont [8/16] 0.0, 128
    %1004 = vxpose.xlu0.b32.cont [9/16] 0.0, 128
    %1005 = vxpose.xlu0.b32.cont [10/16] 0.0, 128
    %1006 = vxpose.xlu0.b32.cont [11/16] 0.0, 128
    %1007 = vxpose.xlu0.b32.cont [12/16] 0.0, 128
    %1008 = vxpose.xlu0.b32.cont [13/16] 0.0, 128
    %1009 = vxpose.xlu0.b32.cont [14/16] 0.0, 128
    %1010 = vxpose.xlu0.b32.cont [15/16] 0.0, 128
    %1011 = vxpose.xlu0.b32.end [16/16] 0.0, 128
    %v1012 = vpop.trf.xlu0
    %v1013 = vpop.trf.xlu0
    %v1014 = vpop.trf.xlu0
    %v1015 = vpop.trf.xlu0
    %v1016 = vpop.trf.xlu0
    %v1017 = vpop.trf.xlu0
    %v1018 = vpop.trf.xlu0
    %v1019 = vpop.trf.xlu0
    %v1020 = vpop.trf.xlu0
    %v1021 = vpop.trf.xlu0
    %v1022 = vpop.trf.xlu0
    %v1023 = vpop.trf.xlu0
    %v1024 = vpop.trf.xlu0
    %v1025 = vpop.trf.xlu0
    %v1026 = vpop.trf.xlu0
    %v1027 = vpop.trf.xlu0
    %v1028 = vlaneseq
    %v1029 = vshrl.u32 %v1028, 7
    %v1030 = vsub.s32 0, %v1029
    %v1031 = vrot.slane %v1012, %v1030
    %v1032 = vadd.f32 %v921, %v1031
    %v1033 = vmul.f32 %v993, 2.0
    %v1034 = vsub.f32 %v1032, %v1033
    %v1035 = vlaneseq
    %v1036 = vand.u32 %v1035, 127
    %vm1037 = vcmask 64512
    %v1038 = vsel %vm1037, %v1034, inf
    %1039 = vmin.xlane.f32.xlu0 %v1038
    %v1040 = vpop.xlane.xlu0 %1039
    %vm1041 = vcmp.eq.f32.partialorder %v1034, %v1040
    %v1042 = vsel %vm1041, %v1036, 8
    %v1043 = vsel %vm1037, %v1042, 2147483647
    %v1044 = vand.u32 %v1043, 65535
    %v1045 = vshra.s32 %v1043, 16
    %v1046 = vcvt.s32.f32 %v1044
    %v1047 = vcvt.s32.f32 %v1045
    %1048 = vmin.xlane.f32.xlu0 %v1047
    %v1049 = vpop.xlane.xlu0 %1048
    %vm1050 = vcmp.eq.f32.partialorder %v1047, %v1049
    %v1051 = vsel %vm1050, %v1046, inf
    %1052 = vmin.xlane.f32.xlu0 %v1051
    %v1053 = vpop.xlane.xlu0 %1052
    %v1054 = vcvt.f32.s32 %v1053
    %v1055 = vcvt.f32.s32 %v1049
    %v1056 = vshll.u32 %v1055, 16
    %v1057 = vadd.s32 %v1056, %v1054
    %vm1058 = vcmp.eq.s32.totalorder %v1036, %v1057
    %v1059 = vsel %vm1058, 1, 0
    %v1060 = vcvt.s32.f32 %v1059
    %v1062 = vsel %vm1037, %v1060, 0
    %1064 = vmatprep.subr.mxu0 0.0
    %1065 = vmatpush1.msra.mxu0 0.0
    %1066 = vmatprep.subr.mxu0 0.0
    %1067 = vmatpush1.msra.mxu0 0.0
    %1068 = vmatprep.subr.mxu0 0.0
    %1069 = vmatpush1.msra.mxu0 0.0
    %1070 = vmatprep.subr.mxu0 0.0
    %1071 = vmatpush1.msra.mxu0 0.0
    %1072 = vmatprep.subr.mxu0 0.0
    %1073 = vmatpush1.msra.mxu0 0.0
    %1074 = vmatprep.subr.mxu0 0.0
    %1075 = vmatpush1.msra.mxu0 0.0
    %1076 = vmatprep.subr.mxu0 0.0
    %1077 = vmatpush1.msra.mxu0 0.0
    %1078 = vmatprep.subr.mxu0 0.0
    %1079 = vmatpush1.msra.mxu0 0.0
    %1080 = vmatprep.subr.mxu0 0.0
    %1081 = vmatpush1.msra.mxu0 0.0
    %1082 = vmatprep.subr.mxu0 0.0
    %1083 = vmatpush1.msra.mxu0 0.0
    %1084 = vmatprep.subr.mxu0 0.0
    %1085 = vmatpush1.msra.mxu0 0.0
    %1086 = vmatprep.subr.mxu0 0.0
    %1087 = vmatpush1.msra.mxu0 0.0
    %1088 = vmatprep.subr.mxu0 0.0
    %1089 = vmatpush1.msra.mxu0 0.0
    %1090 = vmatprep.subr.mxu0 0.0
    %1091 = vmatpush1.msra.mxu0 0.0
    %1092 = vmatprep.subr.mxu0 0.0
    %1093 = vmatpush1.msra.mxu0 0.0
    %1094 = vmatprep.subr.mxu0 0.0
    %1095 = vmatpush1.msra.mxu0 %v915
    %1096 = vmatprep.subr.mxu0 0.0
    %1097 = vmatpush2.msra.mxu0 0.0
    %1098 = vmatprep.subr.mxu0 0.0
    %1099 = vmatpush2.msra.mxu0 0.0
    %1100 = vmatprep.subr.mxu0 0.0
    %1101 = vmatpush2.msra.mxu0 0.0
    %1102 = vmatprep.subr.mxu0 0.0
    %1103 = vmatpush2.msra.mxu0 0.0
    %1104 = vmatprep.subr.mxu0 0.0
    %1105 = vmatpush2.msra.mxu0 0.0
    %1106 = vmatprep.subr.mxu0 0.0
    %1107 = vmatpush2.msra.mxu0 0.0
    %1108 = vmatprep.subr.mxu0 0.0
    %1109 = vmatpush2.msra.mxu0 0.0
    %1110 = vmatprep.subr.mxu0 0.0
    %1111 = vmatpush2.msra.mxu0 0.0
    %1112 = vmatprep.subr.mxu0 0.0
    %1113 = vmatpush2.msra.mxu0 0.0
    %1114 = vmatprep.subr.mxu0 0.0
    %1115 = vmatpush2.msra.mxu0 0.0
    %1116 = vmatprep.subr.mxu0 0.0
    %1117 = vmatpush2.msra.mxu0 0.0
    %1118 = vmatprep.subr.mxu0 0.0
    %1119 = vmatpush2.msra.mxu0 0.0
    %1120 = vmatprep.subr.mxu0 0.0
    %1121 = vmatpush2.msra.mxu0 0.0
    %1122 = vmatprep.subr.mxu0 0.0
    %1123 = vmatpush2.msra.mxu0 0.0
    %1124 = vmatprep.subr.mxu0 0.0
    %1125 = vmatpush2.msra.mxu0 0.0
    %1126 = vmatprep.subr.mxu0 0.0
    %1127 = vmatpush2.msra.mxu0 0.0
    %1128 = vmatprep.mubr.f32.mxu0 0.0
    %1129 = vmatmul.mubr.f32.gmra.mxu0 %v1062
    %v1130 = vpop.f32.mrf.mxu0
    %v1131 = vadd.f32 0.0, %v1130
    %v1132 = vpop.f32.mrf.mxu0
    %1133 = vdwg.mxu0
    %1135 = vrot.lane.b32.xlu0 %v535, 16
    %v1136 = vpop.permute.xlu0 %1135
    %1139 = vrot.lane.b32.xlu0 %v1131, 20
    %v1140 = vpop.permute.xlu0 %1139
    %1143 = vrot.lane.b32.xlu0 %v1034, 22
    %v1144 = vpop.permute.xlu0 %1143
    %v1146 = vsel %vm308, %v303, %v1136
    %vm1147 = vcmask 162816
    %v1148 = vsel %vm1147, %v1146, %v1140
    %vm1149 = vcmask 179200
    %v1150 = vsel %vm1149, %v1148, %v1144
    %vm1151 = vcmask 244736
    %v1152 = vsel %vm1151, %v1150, 0.0
    %1153 = vst [vmem:[#allocation5] sm:$0xff] %v1152
    // Predicated region
    $region14: #{tpu_custom_call.1} parent=1 // pred_check
      _
    $region15: #{tpu_custom_call.1} parent=1 // pred_check_branch
      %1155 = sbr.rel (0) target = $region17
    $region16: #{tpu_custom_call.1} parent=1 // pred_region
      %s1157 = ssub.s32 128, 128
      %1158 = vsyncadd [#allocation4], %s1157
      %s1160 = sshll.u32 [#allocation5], 4
      %s1161 = int_to_ptr.vmem [resolvable:$true] %s1160
      %1163 = dma.vmem_to_hbm [thread:$0]  %s1161, 128, %s2, [#allocation4]
    $region17: #{tpu_custom_call.1} parent=1 // pred_fallthru
      _
    // Predicated region
    $region18: #{tpu_custom_call.1} parent=1 // pred_check
      _
    $region19: #{tpu_custom_call.1} parent=1 // pred_check_branch
      %1165 = sbr.rel (0) target = $region21
    $region20: #{tpu_custom_call.1} parent=1 // pred_region
      %1166 = dma.done [#allocation4], 128
    $region21: #{tpu_custom_call.1} parent=1 // pred_fallthru
      _
    %1167 = vsyncpa [#allocation3], 1
    %1168 = vsyncpa [#allocation4], 1

</llo_original>
